<compile_context>
chip_gen: v7x
topology: tpu7x:2x2x1
jax: 0.10.0
libtpu: 0.0.40
codegen_flags: <defaults>
</compile_context>

<pallas_src>
import math

import jax
import jax.numpy as jnp
import numpy as np
from jax.experimental import pallas as pl
from jax.experimental.pallas import tpu as pltpu

LN_EPS = 1e-5  # torch.nn.LayerNorm default


# ----------------------------- Pallas kernel --------------------------------
def elmo_combine_kernel(wg_ref, states_ref, out_ref):
    """ELMo combination for one tile of token rows.

    wg_ref     : (L,)        f32 SMEM       -- gamma * softmax(weights), folded on host
    states_ref : (L, TM, D)  bf16/f32 VMEM  -- stacked LM states for TM token rows
    out_ref    : (TM, D)     f32 VMEM
    """
    num_layers, _, d = states_ref.shape
    inv_d = 1.0 / d

    acc = None
    for i in range(num_layers):  # static, small L -> unrolled
        s = states_ref[i].astype(jnp.float32)                 # (TM, D) f32 compute
        # one-pass stats: both reductions depend only on s (issue independently)
        sum_s = jnp.sum(s, axis=-1, keepdims=True)             # (TM, 1)
        sum_sq = jnp.sum(s * s, axis=-1, keepdims=True)        # (TM, 1)
        mean = sum_s * inv_d
        var = sum_sq * inv_d - mean * mean                     # biased variance
        # fold the (scalar) layer weight into the per-row rsqrt column
        inv = jax.lax.rsqrt(var + LN_EPS) * wg_ref[i]          # (TM, 1)
        shift = mean * inv                                      # (TM, 1)
        contrib = s * inv - shift                               # (TM, D)
        acc = contrib if acc is None else acc + contrib
    out_ref[...] = acc.astype(out_ref.dtype)                    # single store


# ------------------------------ tiling helpers --------------------------------
def _vmem_budget_bytes():
    """Per-generation tile budget: smaller on v7x (64 MiB VMEM/TC), larger on
    v5e/v6e (128 MiB). Falls back to the conservative value if the query is
    unavailable."""
    cap = None
    try:
        info = pltpu.get_tpu_info()
        cap = getattr(info, "vmem_capacity_bytes", None)
    except Exception:
        cap = None
    if cap is not None and cap >= (100 << 20):
        return 32 << 20   # v5e / v6e: plenty of headroom, bigger tiles
    return 16 << 20       # v7x (64 MiB) or unknown: stay conservative


def _choose_tm(n_rows, num_layers, d, in_bytes, out_bytes,
               vmem_budget_bytes, tm_cap=1024):
    """Row-tile: as large as the VMEM budget allows (double-buffered input tile
    + double-buffered output tile), capped, multiple of 16 (bf16 (16,128) tile).
    Small problems collapse to a single full-extent block; mid-size problems get
    at least 2 grid steps so both v7x TensorCores are used."""
    per_row = 2 * num_layers * d * in_bytes + 2 * d * out_bytes
    tm = max(16, min(tm_cap, vmem_budget_bytes // per_row))
    tm = (tm // 16) * 16
    if n_rows <= tm:
        if n_rows <= 256:
            return n_rows            # single full-extent block (exempt from 8/16 rule)
        half = -(-n_rows // 2)       # ceil(n/2): two grid steps for megacore
        half = ((half + 15) // 16) * 16
        return min(half, tm)
    return tm


def elmo_combine(states_stacked, w, gamma, *, tm=None, out_dtype=jnp.float32):
    """states_stacked: (L, N, D) (bf16 or f32, streamed as-is);
    w: (L,) softmaxed weights; gamma: (1,).  Returns (N, D) in out_dtype."""
    assert states_stacked.ndim == 3
    L, N, D = states_stacked.shape
    assert D % 128 == 0, "feature dim must map to full TPU lanes"

    wg = (gamma[0] * w).astype(jnp.float32)          # fold gamma into weights

    in_bytes = jnp.dtype(states_stacked.dtype).itemsize
    out_bytes = jnp.dtype(out_dtype).itemsize
    if tm is None:
        tm = _choose_tm(N, L, D, in_bytes, out_bytes, _vmem_budget_bytes())
    grid = (pl.cdiv(N, tm),)         # ragged last block handled by Pallas (no host pad)

    # double-buffered input tile + double-buffered output tile + headroom
    tile_bytes = 2 * L * tm * D * in_bytes + 2 * tm * D * out_bytes
    vmem_limit = int(max(tile_bytes + (2 << 20), 16 << 20))

    out = pl.pallas_call(
        elmo_combine_kernel,
        out_shape=jax.ShapeDtypeStruct((N, D), out_dtype),
        grid=grid,
        in_specs=[
            pl.BlockSpec(memory_space=pltpu.MemorySpace.SMEM),   # wg (folded weights)
            pl.BlockSpec((L, tm, D), lambda i: (0, i, 0)),       # states tile
        ],
        out_specs=pl.BlockSpec((tm, D), lambda i: (i, 0)),
        compiler_params=pltpu.CompilerParams(
            dimension_semantics=("parallel",),
            vmem_limit_bytes=vmem_limit,
        ),
    )(wg, states_stacked)
    return out


# ----------------------- synthetic LM + _lm_states glue ----------------------
def synthetic_lm_inner_states(tokens, emb_table, layer_mats):
    """Deterministic stand-in for FairseqLanguageModel inner_states.

    Returns list of (B, T, D_raw) states (already batch-first, matching the
    `s.transpose(0, 1)` in _lm_states). Emits the table/weight dtype directly
    (bf16 in the demo), so no standalone cast of the big states tensor."""
    h = emb_table[tokens]  # (B, T, D_raw)
    inner = [h]
    for W in layer_mats:
        h = jnp.tanh(h @ W)
        inner.append(h)
    return inner


def lm_states_recombine(inner):
    """Reproduces ElmoTokenEmbedder2._lm_states for the default config:
    add_intermediate_context=False, add_final_context=True,
    combine_tower_states=True, add_final_predictive=True."""
    states = list(inner)
    has_final_predictive = (len(states) % 2) == 0
    B, T, Dr = states[-1].shape
    new_states = []
    if has_final_predictive:  # add_final_context
        zeros = jnp.zeros((B, 1, Dr), states[-1].dtype)
        if T == 1:
            s1 = s2 = zeros
        else:
            s1 = jnp.concatenate([zeros, states[-1][:, :-1, :]], axis=1)
            s2 = jnp.concatenate([states[-1][:, 1:, :], zeros], axis=1)
        new_states.extend([s1, s2])
    if has_final_predictive:
        states = states[:-1] + new_states + states[-1:]
    else:
        states = states + new_states

    # combine_tower_states
    def combine(a, b):
        return jnp.concatenate([a, b], axis=-1)

    combined = [combine(states[0], states[0])]
    end = len(states) - (1 if has_final_predictive else 0)
    for i in range(1, end, 2):
        combined.append(combine(states[i], states[i + 1]))
    if has_final_predictive:  # add_final_predictive
        combined.append(combine(states[-1], states[-1]))
    return combined


# ------------------------------ reference (jnp) ------------------------------
def elmo_reference(states_stacked, w, gamma):
    mean = jnp.mean(states_stacked, axis=-1, keepdims=True)
    var = jnp.mean((states_stacked - mean) ** 2, axis=-1, keepdims=True)
    normed = (states_stacked - mean) * jax.lax.rsqrt(var + LN_EPS)
    x = jnp.sum(normed * w[:, None, None], axis=0)
    return gamma[0] * x


# ----------------------------------- main ------------------------------------
if __name__ == "__main__":
    B, T = 2, 12         # batch, sequence  -> N = 24 token rows
    V = 32               # vocab
    D_raw = 64           # LM hidden dim -> ELMo dim = 2 * D_raw = 128
    NUM_RAW = 4          # number of LM inner_states (even -> has_final_predictive)

    key = jax.random.PRNGKey(0)
    k_tok, k_emb, k_w = jax.random.split(key, 3)
    tokens = jax.random.randint(k_tok, (B, T), 0, V, dtype=jnp.int32)
    # LM parameters in bf16 -> LM states are produced in bf16 (cast fused into producer)
    emb_table = jax.random.normal(k_emb, (V, D_raw), jnp.float32).astype(jnp.bfloat16)
    layer_keys = jax.random.split(k_w, NUM_RAW - 1)
    layer_mats = [
        (jax.random.normal(k, (D_raw, D_raw), jnp.float32) / math.sqrt(D_raw)
         ).astype(jnp.bfloat16)
        for k in layer_keys
    ]

    # synthetic LM + ELMo state recombination (glue)
    inner = synthetic_lm_inner_states(tokens, emb_table, layer_mats)
    states = lm_states_recombine(inner)           # list of (B, T, 2*D_raw), bf16
    L = len(states)                               # = 4
    D = states[0].shape[-1]                       # = 128

    # module parameters (deterministic, as in __init__)
    elmo_weights = jnp.ones((L,), jnp.float32)    # nn.Parameter ones, fill_(1.0)
    w = jax.nn.softmax(elmo_weights)              # apply_softmax=True
    gamma = jnp.ones((1,), jnp.float32)           # init_gamma=1.0
    # TODO(synk): weights_dropout / final_dropout are p=0.0 (identity) -> omitted.

    states_stacked = jnp.stack(states, axis=0).reshape(L, B * T, D)  # bf16, no extra cast

    # 1) default path: auto tile -> single full-extent block for this toy size
    out_flat = elmo_combine(states_stacked, w, gamma)
    out = out_flat.reshape(B, T, D)
    jax.block_until_ready(out)

    # 2) ragged-grid path: force tm=16 so the last block is partial (no host pad)
    out_flat_ragged = elmo_combine(states_stacked, w, gamma, tm=16)
    out_ragged = out_flat_ragged.reshape(B, T, D)
    jax.block_until_ready(out_ragged)

    # reference uses the same bf16 inputs (upcast to f32) so the comparison
    # isolates the combination math, not the storage precision
    ref_in = states_stacked.astype(jnp.float32)
    ref = elmo_reference(ref_in, w, gamma).reshape(B, T, D)
    np.testing.assert_allclose(np.asarray(out), np.asarray(ref), rtol=2e-5, atol=2e-5)
    np.testing.assert_allclose(np.asarray(out_ragged), np.asarray(ref), rtol=2e-5, atol=2e-5)

    print("KERNEL_OK")
</pallas_src>

<mosaic_0001>
module attributes {stable_mosaic.version = 11 : i64} {
  func.func @elmo_combine_kernel(%arg0: i32, %arg1: memref<4xf32, #tpu.memory_space<smem>>, %arg2: memref<4x24x128xbf16, #tpu.memory_space<vmem>>, %arg3: memref<24x128xf32, #tpu.memory_space<vmem>>) attributes {dimension_semantics = [#tpu.dimension_semantics<parallel>], iteration_bounds = array<i64: 1>, scalar_prefetch = 0 : i64, scratch_operands = 0 : i64, tpu.core_type = #tpu.core_type<tc>, window_params = [{transform_indices = @transform_0, window_bounds = array<i64: 4>}, {transform_indices = @transform_1, window_bounds = array<i64: 4, 24, 128>}, {transform_indices = @transform_2, window_bounds = array<i64: 24, 128>}]} {
    %c0 = arith.constant 0 : index
    %c0_0 = arith.constant 0 : index
    %c0_1 = arith.constant 0 : index
    %0 = vector.load %arg2[%c0, %c0_0, %c0_1] : memref<4x24x128xbf16, #tpu.memory_space<vmem>>, vector<1x24x128xbf16>
    %1 = vector.shape_cast %0 : vector<1x24x128xbf16> to vector<24x128xbf16>
    %2 = arith.extf %1 : vector<24x128xbf16> to vector<24x128xf32>
    %cst = arith.constant dense<0.000000e+00> : vector<24xf32>
    %3 = vector.multi_reduction <add>, %2, %cst [1] : vector<24x128xf32> to vector<24xf32>
    %4 = vector.shape_cast %3 : vector<24xf32> to vector<24x1xf32>
    %5 = arith.mulf %2, %2 : vector<24x128xf32>
    %cst_2 = arith.constant dense<0.000000e+00> : vector<24xf32>
    %6 = vector.multi_reduction <add>, %5, %cst_2 [1] : vector<24x128xf32> to vector<24xf32>
    %7 = vector.shape_cast %6 : vector<24xf32> to vector<24x1xf32>
    %cst_3 = arith.constant 7.812500e-03 : f32
    %8 = vector.broadcast %cst_3 : f32 to vector<24x1xf32>
    %9 = arith.mulf %4, %8 : vector<24x1xf32>
    %cst_4 = arith.constant 7.812500e-03 : f32
    %10 = vector.broadcast %cst_4 : f32 to vector<24x1xf32>
    %11 = arith.mulf %7, %10 : vector<24x1xf32>
    %12 = arith.mulf %9, %9 : vector<24x1xf32>
    %13 = arith.subf %11, %12 : vector<24x1xf32>
    %cst_5 = arith.constant 9.99999974E-6 : f32
    %14 = vector.broadcast %cst_5 : f32 to vector<24x1xf32>
    %15 = arith.addf %13, %14 : vector<24x1xf32>
    %16 = math.rsqrt %15 : vector<24x1xf32>
    %c0_6 = arith.constant 0 : index
    %17 = memref.load %arg1[%c0_6] : memref<4xf32, #tpu.memory_space<smem>>
    %18 = vector.broadcast %17 : f32 to vector<24x1xf32>
    %19 = arith.mulf %16, %18 : vector<24x1xf32>
    %20 = arith.mulf %9, %19 : vector<24x1xf32>
    %21 = vector.broadcast %19 : vector<24x1xf32> to vector<24x128xf32>
    %22 = arith.mulf %2, %21 : vector<24x128xf32>
    %23 = vector.broadcast %20 : vector<24x1xf32> to vector<24x128xf32>
    %24 = arith.subf %22, %23 : vector<24x128xf32>
    %c1 = arith.constant 1 : index
    %c0_7 = arith.constant 0 : index
    %c0_8 = arith.constant 0 : index
    %25 = vector.load %arg2[%c1, %c0_7, %c0_8] : memref<4x24x128xbf16, #tpu.memory_space<vmem>>, vector<1x24x128xbf16>
    %26 = vector.shape_cast %25 : vector<1x24x128xbf16> to vector<24x128xbf16>
    %27 = arith.extf %26 : vector<24x128xbf16> to vector<24x128xf32>
    %cst_9 = arith.constant dense<0.000000e+00> : vector<24xf32>
    %28 = vector.multi_reduction <add>, %27, %cst_9 [1] : vector<24x128xf32> to vector<24xf32>
    %29 = vector.shape_cast %28 : vector<24xf32> to vector<24x1xf32>
    %30 = arith.mulf %27, %27 : vector<24x128xf32>
    %cst_10 = arith.constant dense<0.000000e+00> : vector<24xf32>
    %31 = vector.multi_reduction <add>, %30, %cst_10 [1] : vector<24x128xf32> to vector<24xf32>
    %32 = vector.shape_cast %31 : vector<24xf32> to vector<24x1xf32>
    %cst_11 = arith.constant 7.812500e-03 : f32
    %33 = vector.broadcast %cst_11 : f32 to vector<24x1xf32>
    %34 = arith.mulf %29, %33 : vector<24x1xf32>
    %cst_12 = arith.constant 7.812500e-03 : f32
    %35 = vector.broadcast %cst_12 : f32 to vector<24x1xf32>
    %36 = arith.mulf %32, %35 : vector<24x1xf32>
    %37 = arith.mulf %34, %34 : vector<24x1xf32>
    %38 = arith.subf %36, %37 : vector<24x1xf32>
    %cst_13 = arith.constant 9.99999974E-6 : f32
    %39 = vector.broadcast %cst_13 : f32 to vector<24x1xf32>
    %40 = arith.addf %38, %39 : vector<24x1xf32>
    %41 = math.rsqrt %40 : vector<24x1xf32>
    %c1_14 = arith.constant 1 : index
    %42 = memref.load %arg1[%c1_14] : memref<4xf32, #tpu.memory_space<smem>>
    %43 = vector.broadcast %42 : f32 to vector<24x1xf32>
    %44 = arith.mulf %41, %43 : vector<24x1xf32>
    %45 = arith.mulf %34, %44 : vector<24x1xf32>
    %46 = vector.broadcast %44 : vector<24x1xf32> to vector<24x128xf32>
    %47 = arith.mulf %27, %46 : vector<24x128xf32>
    %48 = vector.broadcast %45 : vector<24x1xf32> to vector<24x128xf32>
    %49 = arith.subf %47, %48 : vector<24x128xf32>
    %50 = arith.addf %24, %49 : vector<24x128xf32>
    %c2 = arith.constant 2 : index
    %c0_15 = arith.constant 0 : index
    %c0_16 = arith.constant 0 : index
    %51 = vector.load %arg2[%c2, %c0_15, %c0_16] : memref<4x24x128xbf16, #tpu.memory_space<vmem>>, vector<1x24x128xbf16>
    %52 = vector.shape_cast %51 : vector<1x24x128xbf16> to vector<24x128xbf16>
    %53 = arith.extf %52 : vector<24x128xbf16> to vector<24x128xf32>
    %cst_17 = arith.constant dense<0.000000e+00> : vector<24xf32>
    %54 = vector.multi_reduction <add>, %53, %cst_17 [1] : vector<24x128xf32> to vector<24xf32>
    %55 = vector.shape_cast %54 : vector<24xf32> to vector<24x1xf32>
    %56 = arith.mulf %53, %53 : vector<24x128xf32>
    %cst_18 = arith.constant dense<0.000000e+00> : vector<24xf32>
    %57 = vector.multi_reduction <add>, %56, %cst_18 [1] : vector<24x128xf32> to vector<24xf32>
    %58 = vector.shape_cast %57 : vector<24xf32> to vector<24x1xf32>
    %cst_19 = arith.constant 7.812500e-03 : f32
    %59 = vector.broadcast %cst_19 : f32 to vector<24x1xf32>
    %60 = arith.mulf %55, %59 : vector<24x1xf32>
    %cst_20 = arith.constant 7.812500e-03 : f32
    %61 = vector.broadcast %cst_20 : f32 to vector<24x1xf32>
    %62 = arith.mulf %58, %61 : vector<24x1xf32>
    %63 = arith.mulf %60, %60 : vector<24x1xf32>
    %64 = arith.subf %62, %63 : vector<24x1xf32>
    %cst_21 = arith.constant 9.99999974E-6 : f32
    %65 = vector.broadcast %cst_21 : f32 to vector<24x1xf32>
    %66 = arith.addf %64, %65 : vector<24x1xf32>
    %67 = math.rsqrt %66 : vector<24x1xf32>
    %c2_22 = arith.constant 2 : index
    %68 = memref.load %arg1[%c2_22] : memref<4xf32, #tpu.memory_space<smem>>
    %69 = vector.broadcast %68 : f32 to vector<24x1xf32>
    %70 = arith.mulf %67, %69 : vector<24x1xf32>
    %71 = arith.mulf %60, %70 : vector<24x1xf32>
    %72 = vector.broadcast %70 : vector<24x1xf32> to vector<24x128xf32>
    %73 = arith.mulf %53, %72 : vector<24x128xf32>
    %74 = vector.broadcast %71 : vector<24x1xf32> to vector<24x128xf32>
    %75 = arith.subf %73, %74 : vector<24x128xf32>
    %76 = arith.addf %50, %75 : vector<24x128xf32>
    %c3 = arith.constant 3 : index
    %c0_23 = arith.constant 0 : index
    %c0_24 = arith.constant 0 : index
    %77 = vector.load %arg2[%c3, %c0_23, %c0_24] : memref<4x24x128xbf16, #tpu.memory_space<vmem>>, vector<1x24x128xbf16>
    %78 = vector.shape_cast %77 : vector<1x24x128xbf16> to vector<24x128xbf16>
    %79 = arith.extf %78 : vector<24x128xbf16> to vector<24x128xf32>
    %cst_25 = arith.constant dense<0.000000e+00> : vector<24xf32>
    %80 = vector.multi_reduction <add>, %79, %cst_25 [1] : vector<24x128xf32> to vector<24xf32>
    %81 = vector.shape_cast %80 : vector<24xf32> to vector<24x1xf32>
    %82 = arith.mulf %79, %79 : vector<24x128xf32>
    %cst_26 = arith.constant dense<0.000000e+00> : vector<24xf32>
    %83 = vector.multi_reduction <add>, %82, %cst_26 [1] : vector<24x128xf32> to vector<24xf32>
    %84 = vector.shape_cast %83 : vector<24xf32> to vector<24x1xf32>
    %cst_27 = arith.constant 7.812500e-03 : f32
    %85 = vector.broadcast %cst_27 : f32 to vector<24x1xf32>
    %86 = arith.mulf %81, %85 : vector<24x1xf32>
    %cst_28 = arith.constant 7.812500e-03 : f32
    %87 = vector.broadcast %cst_28 : f32 to vector<24x1xf32>
    %88 = arith.mulf %84, %87 : vector<24x1xf32>
    %89 = arith.mulf %86, %86 : vector<24x1xf32>
    %90 = arith.subf %88, %89 : vector<24x1xf32>
    %cst_29 = arith.constant 9.99999974E-6 : f32
    %91 = vector.broadcast %cst_29 : f32 to vector<24x1xf32>
    %92 = arith.addf %90, %91 : vector<24x1xf32>
    %93 = math.rsqrt %92 : vector<24x1xf32>
    %c3_30 = arith.constant 3 : index
    %94 = memref.load %arg1[%c3_30] : memref<4xf32, #tpu.memory_space<smem>>
    %95 = vector.broadcast %94 : f32 to vector<24x1xf32>
    %96 = arith.mulf %93, %95 : vector<24x1xf32>
    %97 = arith.mulf %86, %96 : vector<24x1xf32>
    %98 = vector.broadcast %96 : vector<24x1xf32> to vector<24x128xf32>
    %99 = arith.mulf %79, %98 : vector<24x128xf32>
    %100 = vector.broadcast %97 : vector<24x1xf32> to vector<24x128xf32>
    %101 = arith.subf %99, %100 : vector<24x128xf32>
    %102 = arith.addf %76, %101 : vector<24x128xf32>
    %c0_31 = arith.constant 0 : index
    %c0_32 = arith.constant 0 : index
    %103 = vector.load %arg3[%c0_31, %c0_32] : memref<24x128xf32, #tpu.memory_space<vmem>>, vector<24x128xf32>
    tpu.vector_store %arg3[%c0_31, %c0_32], %102 {strides = array<i32>} : memref<24x128xf32, #tpu.memory_space<vmem>>, vector<24x128xf32>,
    return
  }
  func.func @transform_0(%arg0: i32) -> i32 {
    %c0_i32 = arith.constant 0 : i32
    %c0_i32_0 = arith.constant 0 : i32
    return %c0_i32 : i32
  }
  func.func @transform_1(%arg0: i32) -> (i32, i32, i32) {
    %c0_i32 = arith.constant 0 : i32
    %c0_i32_0 = arith.constant 0 : i32
    %c0_i32_1 = arith.constant 0 : i32
    return %c0_i32, %arg0, %c0_i32_0 : i32, i32, i32
  }
  func.func @transform_2(%arg0: i32) -> (i32, i32) {
    %c0_i32 = arith.constant 0 : i32
    %c0_i32_0 = arith.constant 0 : i32
    return %arg0, %c0_i32 : i32, i32
  }
}

</mosaic_0001>

<llo_original>
// kernel: tpu_custom_call.1
$region0: #{tpu_custom_call.1}
  #allocation0 [shape = 'u32[]', space=smem, size = 0x4, offset = 0x4, fixed_abs, tag = 'smem constant byte address 0x4 - core index']
  #allocation1 [shape = 'u32[144,128]{1,0:T(1,128)}', space=vmem, size = 0x12000, scoped, tag = 'internal scratch']
  %s0 = inlined_call_operand.hbm [shape: f32[4], index: 0, kind: input, shape index: {}]
  %s1 = inlined_call_operand.hbm [shape: bf16[4,24,128], index: 1, kind: input, shape index: {}]
  %s2 = inlined_call_operand.hbm [shape: f32[24,128], index: 2, kind: output, shape index: {}]
  %s3 = sld [smem:[#allocation0]]
  $region26: #{tpu_custom_call.1} parent=0
    _
  %s5 = ssub.s32 1, %s3
  %s6 = scalar_select 0, %s5, %s3
  $region1: #{tpu_custom_call.1} parent=0
    #allocation2 [shape = 'u8[512]{0}', space=smem, size = 0x200, scoped, tag = 'input window, operand 0, single buffered']
    #allocation3 [shape = 's32[1]{0}', space=sflag, size = 0x4, scoped, tag = 'scoped memory for tpu_custom_call.1']
    #allocation4 [shape = 's32[1]{0}', space=sflag, size = 0x4, scoped, tag = 'scoped memory for tpu_custom_call.1']
    #allocation5 [shape = 's32[1]{0}', space=sflag, size = 0x4, scoped, tag = 'scoped memory for tpu_custom_call.1']
    #allocation6 [shape = 'u8[24576]{0}', space=vmem, size = 0x6000, scoped, tag = 'input window, operand 1, single buffered']
    #allocation7 [shape = 'u8[12288]{0}', space=vmem, size = 0x3000, scoped, tag = 'output window, operand 0, single buffered']
    %7 = vsyncpa [#allocation5], 0
    %8 = vsyncpa [#allocation3], 0
    %9 = vsyncpa [#allocation4], 0
    // Predicated region
    $region2: #{tpu_custom_call.1} parent=1 // pred_check
      _
    $region3: #{tpu_custom_call.1} parent=1 // pred_check_branch
      %11 = sbr.rel (0) target = $region5
    $region4: #{tpu_custom_call.1} parent=1 // pred_region
      %s13 = ssub.s32 16, 16
      %14 = vsyncadd [#allocation5], %s13
      %17 = dma.hbm_to_smem %s0, 16, [#allocation2], [#allocation5]
    $region5: #{tpu_custom_call.1} parent=1 // pred_fallthru
      _
    // Predicated region
    $region6: #{tpu_custom_call.1} parent=1 // pred_check
      _
    $region7: #{tpu_custom_call.1} parent=1 // pred_check_branch
      %19 = sbr.rel (0) target = $region9
    $region8: #{tpu_custom_call.1} parent=1 // pred_region
      %s21 = ssub.s32 768, 768
      %22 = vsyncadd [#allocation3], %s21
      %s23 = sshll.u32 [#allocation6], 4
      %s24 = int_to_ptr.vmem [resolvable:$true] %s23
      %29 = dma.hbm_to_vmem [thread:$0]  %s1, 768, %s24, [#allocation3], 64, 64, 4
    $region9: #{tpu_custom_call.1} parent=1 // pred_fallthru
      _
    // Predicated region
    $region10: #{tpu_custom_call.1} parent=1 // pred_check
      _
    $region11: #{tpu_custom_call.1} parent=1 // pred_check_branch
      %31 = sbr.rel (0) target = $region13
    $region12: #{tpu_custom_call.1} parent=1 // pred_region
      %32 = dma.done [#allocation5], 16
    $region13: #{tpu_custom_call.1} parent=1 // pred_fallthru
      _
    // Predicated region
    $region14: #{tpu_custom_call.1} parent=1 // pred_check
      _
    $region15: #{tpu_custom_call.1} parent=1 // pred_check_branch
      %34 = sbr.rel (0) target = $region17
    $region16: #{tpu_custom_call.1} parent=1 // pred_region
      %35 = dma.done [#allocation3], 768
    $region17: #{tpu_custom_call.1} parent=1 // pred_fallthru
      _
    %36 = sfence
    %v37 = vld [vmem:[#allocation6] sm:$0xf]
    %v38 = vld [vmem:[#allocation6 + $0x4] sm:$0xf]
    %v39 = vld [vmem:[#allocation6 + $0x8] sm:$0xf]
    %v40 = vunpack.c.l.bf16 %v37
    %v41 = vunpack.c.l.bf16 %v38
    %v42 = vunpack.c.l.bf16 %v39
    %43 = vadd.xlane.f32.xlu0 %v40
    %v44 = vpop.xlane.xlu0 %43
    %45 = vadd.xlane.f32.xlu0 %v41
    %v46 = vpop.xlane.xlu0 %45
    %47 = vadd.xlane.f32.xlu0 %v42
    %v48 = vpop.xlane.xlu0 %47
    %v49 = vmul.f32 %v40, %v40
    %v50 = vmul.f32 %v41, %v41
    %v51 = vmul.f32 %v42, %v42
    %52 = vadd.xlane.f32.xlu0 %v49
    %v53 = vpop.xlane.xlu0 %52
    %54 = vadd.xlane.f32.xlu0 %v50
    %v55 = vpop.xlane.xlu0 %54
    %56 = vadd.xlane.f32.xlu0 %v51
    %v57 = vpop.xlane.xlu0 %56
    %v58 = vmul.f32 %v44, 0.0078125
    %v59 = vmul.f32 %v46, 0.0078125
    %v60 = vmul.f32 %v48, 0.0078125
    %v61 = vmul.f32 %v53, 0.0078125
    %v62 = vmul.f32 %v55, 0.0078125
    %v63 = vmul.f32 %v57, 0.0078125
    %v64 = vmul.f32 %v58, %v58
    %v65 = vmul.f32 %v59, %v59
    %v66 = vmul.f32 %v60, %v60
    %v67 = vsub.f32 %v61, %v64
    %v68 = vsub.f32 %v62, %v65
    %v69 = vsub.f32 %v63, %v66
    %v70 = vadd.f32 %v67, 1e-05
    %v71 = vadd.f32 %v68, 1e-05
    %v72 = vadd.f32 %v69, 1e-05
    %v73 = vrsqrt.pop %v70
    %v74 = vrsqrt.pop %v71
    %v75 = vrsqrt.pop %v72
    %s76 = sld [smem:[#allocation2]]
    %v77 = vstv %s76
    %v78 = vmul.f32 %v73, %v77
    %v79 = vmul.f32 %v74, %v77
    %v80 = vmul.f32 %v75, %v77
    %v81 = vmul.f32 %v58, %v78
    %v82 = vmul.f32 %v59, %v79
    %v83 = vmul.f32 %v60, %v80
    %v84 = vmul.f32 %v40, %v78
    %v85 = vmul.f32 %v41, %v79
    %v86 = vmul.f32 %v42, %v80
    %v87 = vsub.f32 %v84, %v81
    %v88 = vsub.f32 %v85, %v82
    %v89 = vsub.f32 %v86, %v83
    %s90 = scalar_lea.vmem [#allocation6], 12
    %v91 = vld [vmem:[%s90] sm:$0xf]
    %v92 = vld [vmem:[%s90 + $0x4] sm:$0xf]
    %v93 = vld [vmem:[%s90 + $0x8] sm:$0xf]
    %v94 = vunpack.c.l.bf16 %v91
    %v95 = vunpack.c.l.bf16 %v92
    %v96 = vunpack.c.l.bf16 %v93
    %97 = vadd.xlane.f32.xlu0 %v94
    %v98 = vpop.xlane.xlu0 %97
    %99 = vadd.xlane.f32.xlu0 %v95
    %v100 = vpop.xlane.xlu0 %99
    %101 = vadd.xlane.f32.xlu0 %v96
    %v102 = vpop.xlane.xlu0 %101
    %v103 = vmul.f32 %v94, %v94
    %v104 = vmul.f32 %v95, %v95
    %v105 = vmul.f32 %v96, %v96
    %106 = vadd.xlane.f32.xlu0 %v103
    %v107 = vpop.xlane.xlu0 %106
    %108 = vadd.xlane.f32.xlu0 %v104
    %v109 = vpop.xlane.xlu0 %108
    %110 = vadd.xlane.f32.xlu0 %v105
    %v111 = vpop.xlane.xlu0 %110
    %v112 = vmul.f32 %v98, 0.0078125
    %v113 = vmul.f32 %v100, 0.0078125
    %v114 = vmul.f32 %v102, 0.0078125
    %v115 = vmul.f32 %v107, 0.0078125
    %v116 = vmul.f32 %v109, 0.0078125
    %v117 = vmul.f32 %v111, 0.0078125
    %v118 = vmul.f32 %v112, %v112
    %v119 = vmul.f32 %v113, %v113
    %v120 = vmul.f32 %v114, %v114
    %v121 = vsub.f32 %v115, %v118
    %v122 = vsub.f32 %v116, %v119
    %v123 = vsub.f32 %v117, %v120
    %v124 = vadd.f32 %v121, 1e-05
    %v125 = vadd.f32 %v122, 1e-05
    %v126 = vadd.f32 %v123, 1e-05
    %v127 = vrsqrt.pop %v124
    %v128 = vrsqrt.pop %v125
    %v129 = vrsqrt.pop %v126
    %s130 = sld [smem:[#allocation2 + $0x1]]
    %v131 = vstv %s130
    %v132 = vmul.f32 %v127, %v131
    %v133 = vmul.f32 %v128, %v131
    %v134 = vmul.f32 %v129, %v131
    %v135 = vmul.f32 %v112, %v132
    %v136 = vmul.f32 %v113, %v133
    %v137 = vmul.f32 %v114, %v134
    %v138 = vmul.f32 %v94, %v132
    %v139 = vmul.f32 %v95, %v133
    %v140 = vmul.f32 %v96, %v134
    %v141 = vsub.f32 %v138, %v135
    %v142 = vsub.f32 %v139, %v136
    %v143 = vsub.f32 %v140, %v137
    %v144 = vadd.f32 %v87, %v141
    %v145 = vadd.f32 %v88, %v142
    %v146 = vadd.f32 %v89, %v143
    %s147 = scalar_lea.vmem [#allocation6], 24
    %v148 = vld [vmem:[%s147] sm:$0xf]
    %v149 = vld [vmem:[%s147 + $0x4] sm:$0xf]
    %v150 = vld [vmem:[%s147 + $0x8] sm:$0xf]
    %v151 = vunpack.c.l.bf16 %v148
    %v152 = vunpack.c.l.bf16 %v149
    %v153 = vunpack.c.l.bf16 %v150
    %154 = vadd.xlane.f32.xlu0 %v151
    %v155 = vpop.xlane.xlu0 %154
    %156 = vadd.xlane.f32.xlu0 %v152
    %v157 = vpop.xlane.xlu0 %156
    %158 = vadd.xlane.f32.xlu0 %v153
    %v159 = vpop.xlane.xlu0 %158
    %v160 = vmul.f32 %v151, %v151
    %v161 = vmul.f32 %v152, %v152
    %v162 = vmul.f32 %v153, %v153
    %163 = vadd.xlane.f32.xlu0 %v160
    %v164 = vpop.xlane.xlu0 %163
    %165 = vadd.xlane.f32.xlu0 %v161
    %v166 = vpop.xlane.xlu0 %165
    %167 = vadd.xlane.f32.xlu0 %v162
    %v168 = vpop.xlane.xlu0 %167
    %v169 = vmul.f32 %v155, 0.0078125
    %v170 = vmul.f32 %v157, 0.0078125
    %v171 = vmul.f32 %v159, 0.0078125
    %v172 = vmul.f32 %v164, 0.0078125
    %v173 = vmul.f32 %v166, 0.0078125
    %v174 = vmul.f32 %v168, 0.0078125
    %v175 = vmul.f32 %v169, %v169
    %v176 = vmul.f32 %v170, %v170
    %v177 = vmul.f32 %v171, %v171
    %v178 = vsub.f32 %v172, %v175
    %v179 = vsub.f32 %v173, %v176
    %v180 = vsub.f32 %v174, %v177
    %v181 = vadd.f32 %v178, 1e-05
    %v182 = vadd.f32 %v179, 1e-05
    %v183 = vadd.f32 %v180, 1e-05
    %v184 = vrsqrt.pop %v181
    %v185 = vrsqrt.pop %v182
    %v186 = vrsqrt.pop %v183
    %s187 = sld [smem:[#allocation2 + $0x2]]
    %v188 = vstv %s187
    %v189 = vmul.f32 %v184, %v188
    %v190 = vmul.f32 %v185, %v188
    %v191 = vmul.f32 %v186, %v188
    %v192 = vmul.f32 %v169, %v189
    %v193 = vmul.f32 %v170, %v190
    %v194 = vmul.f32 %v171, %v191
    %v195 = vmul.f32 %v151, %v189
    %v196 = vmul.f32 %v152, %v190
    %v197 = vmul.f32 %v153, %v191
    %v198 = vsub.f32 %v195, %v192
    %v199 = vsub.f32 %v196, %v193
    %v200 = vsub.f32 %v197, %v194
    %v201 = vadd.f32 %v144, %v198
    %v202 = vadd.f32 %v145, %v199
    %v203 = vadd.f32 %v146, %v200
    %s204 = scalar_lea.vmem [#allocation6], 36
    %v205 = vld [vmem:[%s204] sm:$0xf]
    %v206 = vld [vmem:[%s204 + $0x4] sm:$0xf]
    %v207 = vld [vmem:[%s204 + $0x8] sm:$0xf]
    %v208 = vunpack.c.l.bf16 %v205
    %v209 = vunpack.c.l.bf16 %v206
    %v210 = vunpack.c.l.bf16 %v207
    %211 = vadd.xlane.f32.xlu0 %v208
    %v212 = vpop.xlane.xlu0 %211
    %213 = vadd.xlane.f32.xlu0 %v209
    %v214 = vpop.xlane.xlu0 %213
    %215 = vadd.xlane.f32.xlu0 %v210
    %v216 = vpop.xlane.xlu0 %215
    %v217 = vmul.f32 %v208, %v208
    %v218 = vmul.f32 %v209, %v209
    %v219 = vmul.f32 %v210, %v210
    %220 = vadd.xlane.f32.xlu0 %v217
    %v221 = vpop.xlane.xlu0 %220
    %222 = vadd.xlane.f32.xlu0 %v218
    %v223 = vpop.xlane.xlu0 %222
    %224 = vadd.xlane.f32.xlu0 %v219
    %v225 = vpop.xlane.xlu0 %224
    %v226 = vmul.f32 %v212, 0.0078125
    %v227 = vmul.f32 %v214, 0.0078125
    %v228 = vmul.f32 %v216, 0.0078125
    %v229 = vmul.f32 %v221, 0.0078125
    %v230 = vmul.f32 %v223, 0.0078125
    %v231 = vmul.f32 %v225, 0.0078125
    %v232 = vmul.f32 %v226, %v226
    %v233 = vmul.f32 %v227, %v227
    %v234 = vmul.f32 %v228, %v228
    %v235 = vsub.f32 %v229, %v232
    %v236 = vsub.f32 %v230, %v233
    %v237 = vsub.f32 %v231, %v234
    %v238 = vadd.f32 %v235, 1e-05
    %v239 = vadd.f32 %v236, 1e-05
    %v240 = vadd.f32 %v237, 1e-05
    %v241 = vrsqrt.pop %v238
    %v242 = vrsqrt.pop %v239
    %v243 = vrsqrt.pop %v240
    %s244 = sld [smem:[#allocation2 + $0x3]]
    %v245 = vstv %s244
    %v246 = vmul.f32 %v241, %v245
    %v247 = vmul.f32 %v242, %v245
    %v248 = vmul.f32 %v243, %v245
    %v249 = vmul.f32 %v226, %v246
    %v250 = vmul.f32 %v227, %v247
    %v251 = vmul.f32 %v228, %v248
    %v252 = vmul.f32 %v208, %v246
    %v253 = vmul.f32 %v209, %v247
    %v254 = vmul.f32 %v210, %v248
    %v255 = vsub.f32 %v252, %v249
    %v256 = vsub.f32 %v253, %v250
    %v257 = vsub.f32 %v254, %v251
    %v258 = vadd.f32 %v201, %v255
    %v259 = vadd.f32 %v202, %v256
    %v260 = vadd.f32 %v203, %v257
    %261 = vst [vmem:[#allocation7] sm:$0xff] %v258
    %262 = vst [vmem:[#allocation7 + $0x8] sm:$0xff] %v259
    %263 = vst [vmem:[#allocation7 + $0x10] sm:$0xff] %v260
    // Predicated region
    $region18: #{tpu_custom_call.1} parent=1 // pred_check
      _
    $region19: #{tpu_custom_call.1} parent=1 // pred_check_branch
      %265 = sbr.rel (0) target = $region21
    $region20: #{tpu_custom_call.1} parent=1 // pred_region
      %s267 = ssub.s32 384, 384
      %268 = vsyncadd [#allocation4], %s267
      %s269 = sshll.u32 [#allocation7], 4
      %s270 = int_to_ptr.vmem [resolvable:$true] %s269
      %275 = dma.vmem_to_hbm [thread:$0]  %s270, 384, %s2, [#allocation4], 128, 128, 8
    $region21: #{tpu_custom_call.1} parent=1 // pred_fallthru
      _
    // Predicated region
    $region22: #{tpu_custom_call.1} parent=1 // pred_check
      _
    $region23: #{tpu_custom_call.1} parent=1 // pred_check_branch
      %277 = sbr.rel (0) target = $region25
    $region24: #{tpu_custom_call.1} parent=1 // pred_region
      %278 = dma.done [#allocation4], 384
    $region25: #{tpu_custom_call.1} parent=1 // pred_fallthru
      _
    %279 = vsyncpa [#allocation3], 1
    %280 = vsyncpa [#allocation4], 1
    %281 = vsyncpa [#allocation5], 1

</llo_original>
